<compile_context>
chip_gen: v7x
topology: tpu7x:2x2x1
jax: 0.10.0
libtpu: 0.0.40
codegen_flags: <defaults>
</compile_context>

<pallas_src>
import functools

import jax
import jax.numpy as jnp
from jax.experimental import pallas as pl
from jax.experimental.pallas import tpu as pltpu

_LANE = 128


def _round_up(n, m):
    return ((n + m - 1) // m) * m


def _mlp_kernel(x_ref, w1_ref, b1_ref, w2_ref, b2_ref, w3_ref, b3_ref,
                o_ref, h1_ref, h2_ref):
    # fc1 + ReLU. x arrives as f32 (no wrapper-side cast pass); cast to bf16 on
    # the VPU right before the MXU so matmul operands are bf16 with f32
    # accumulation. Bias + ReLU epilogue stays f32; store bf16 to scratch.
    x_bf = x_ref[...].astype(jnp.bfloat16)
    h1 = jnp.dot(x_bf, w1_ref[...], preferred_element_type=jnp.float32)
    h1_ref[...] = jnp.maximum(h1 + b1_ref[...], 0.0).astype(jnp.bfloat16)
    # fc2 + ReLU (bf16 operands straight from VMEM scratch).
    h2 = jnp.dot(h1_ref[...], w2_ref[...], preferred_element_type=jnp.float32)
    h2_ref[...] = jnp.maximum(h2 + b2_ref[...], 0.0).astype(jnp.bfloat16)
    # fc3 (no activation). Output written at its true width (out_f = 64).
    h3 = jnp.dot(h2_ref[...], w3_ref[...], preferred_element_type=jnp.float32)
    o_ref[...] = (h3 + b3_ref[...]).astype(o_ref.dtype)


@functools.partial(jax.jit, static_argnames=("block_b",))
def recognition_forward(x, params, block_b=2048):
    """x: (B, input_size) float32. params: dict of w1,b1,w2,b2,w3,b3 (f32)."""
    w1, b1 = params["w1"], params["b1"]
    w2, b2 = params["w2"], params["b2"]
    w3, b3 = params["w3"], params["b3"]
    B, in_f = x.shape
    h1_f, h2_f, out_f = w1.shape[1], w2.shape[1], w3.shape[1]

    # Batch tile: multiple of 128 MXU rows, capped at block_b. Keep the grid at
    # >=2 steps when the batch spans >=2 lane quanta so v7x's two TensorCores
    # both get work; the extra step is near-free on single-TC chips.
    B_lane = _round_up(B, _LANE)
    blk = min(block_b, B_lane)
    if blk == B_lane and B_lane >= 2 * _LANE:
        blk = _round_up(B_lane // 2, _LANE)
    B_p = _round_up(B, blk)
    if B_p != B:
        # Padded rows produce relu(bias) garbage; sliced off below, never read.
        x = jnp.pad(x, ((0, B_p - B), (0, 0)))

    # Weights as bf16 MXU operands (tiny one-time casts). Biases stay f32 so
    # the bias/ReLU epilogue runs in f32 on the VPU (v5e-safe). x stays f32 and
    # is cast inside the kernel — no separate full-array cast pass over x.
    w1_bf = w1.astype(jnp.bfloat16)
    w2_bf = w2.astype(jnp.bfloat16)
    w3_bf = w3.astype(jnp.bfloat16)

    grid = (B_p // blk,)
    # Constant index_map -> weights/biases resident in VMEM, no per-step DMA.
    full = lambda a: pl.BlockSpec(a.shape, lambda i: (0,) * a.ndim)

    flops = 2 * B_p * (in_f * h1_f + h1_f * h2_f + h2_f * out_f)
    bytes_accessed = (
        B_p * in_f * 4                                   # x read (f32)
        + B_p * out_f * 4                                # output write (f32)
        + (in_f * h1_f + h1_f * h2_f + h2_f * out_f) * 2  # bf16 weights
        + (h1_f + h2_f + out_f) * 4)                     # f32 biases

    out = pl.pallas_call(
        _mlp_kernel,
        out_shape=jax.ShapeDtypeStruct((B_p, out_f), jnp.float32),
        grid_spec=pltpu.PrefetchScalarGridSpec(
            num_scalar_prefetch=0,
            grid=grid,
            in_specs=[
                pl.BlockSpec((blk, in_f), lambda i: (i, 0)),   # x tile (f32)
                full(w1_bf), full(b1),
                full(w2_bf), full(b2),
                full(w3_bf), full(b3),
            ],
            out_specs=pl.BlockSpec((blk, out_f), lambda i: (i, 0)),
            scratch_shapes=[
                pltpu.VMEM((blk, h1_f), jnp.bfloat16),   # h1 (blk, 256) bf16
                pltpu.VMEM((blk, h2_f), jnp.bfloat16),   # h2 (blk, 128) bf16
            ],
        ),
        compiler_params=pltpu.CompilerParams(
            dimension_semantics=("parallel",),
            vmem_limit_bytes=32 * 1024 * 1024),
        cost_estimate=pl.CostEstimate(
            flops=flops, transcendentals=0, bytes_accessed=bytes_accessed),
    )(x, w1_bf, b1, w2_bf, b2, w3_bf, b3)

    return out[:B] if B_p != B else out


def init_recognition_params(key, input_size=512, output_size=64):
    """Deterministic init mirroring nn.Linear's default U(-1/sqrt(fan_in), +)."""
    dims = [(input_size, 256), (256, 128), (128, output_size)]
    params = {}
    for idx, (fan_in, fan_out) in enumerate(dims, start=1):
        key, kw, kb = jax.random.split(key, 3)
        bound = 1.0 / jnp.sqrt(jnp.float32(fan_in))
        params[f"w{idx}"] = jax.random.uniform(
            kw, (fan_in, fan_out), jnp.float32, -bound, bound)
        params[f"b{idx}"] = jax.random.uniform(
            kb, (1, fan_out), jnp.float32, -bound, bound)
    return params


def recognition_reference(x, params):
    h = jnp.maximum(x @ params["w1"] + params["b1"], 0.0)
    h = jnp.maximum(h @ params["w2"] + params["b2"], 0.0)
    return h @ params["w3"] + params["b3"]


def recognition_reference_bf16(x, params):
    """Mirror of the kernel's bf16-operand / f32-accumulate math."""
    def lin(h, w, b):
        return jnp.dot(h.astype(jnp.bfloat16), w.astype(jnp.bfloat16),
                       preferred_element_type=jnp.float32) + b
    h = jnp.maximum(lin(x, params["w1"], params["b1"]), 0.0)
    h = jnp.maximum(lin(h, params["w2"], params["b2"]), 0.0)
    return lin(h, params["w3"], params["b3"])


if __name__ == "__main__":
    key = jax.random.PRNGKey(0)
    kx, kp = jax.random.split(key)

    input_size, output_size = 512, 64
    batch = 8  # ragged vs. the 128-row tile -> exercises the padding path
    x = jax.random.normal(kx, (batch, input_size), jnp.float32)
    params = init_recognition_params(kp, input_size, output_size)

    out = jax.block_until_ready(recognition_forward(x, params))
    assert out.shape == (batch, output_size)

    ref_bf = recognition_reference_bf16(x, params)
    ref_f32 = recognition_reference(x, params)
    assert jnp.allclose(out, ref_bf, atol=2e-3, rtol=2e-3), "mismatch vs bf16 ref"
    assert jnp.allclose(out, ref_f32, atol=5e-2, rtol=5e-2), "mismatch vs f32 ref"

    print("KERNEL_OK")
</pallas_src>

<mosaic_0001>
module attributes {stable_mosaic.version = 11 : i64} {
  func.func @_mlp_kernel(%arg0: i32, %arg1: memref<128x512xf32, #tpu.memory_space<vmem>>, %arg2: memref<512x256xbf16, #tpu.memory_space<vmem>>, %arg3: memref<1x256xf32, #tpu.memory_space<vmem>>, %arg4: memref<256x128xbf16, #tpu.memory_space<vmem>>, %arg5: memref<1x128xf32, #tpu.memory_space<vmem>>, %arg6: memref<128x64xbf16, #tpu.memory_space<vmem>>, %arg7: memref<1x64xf32, #tpu.memory_space<vmem>>, %arg8: memref<128x64xf32, #tpu.memory_space<vmem>>, %arg9: memref<128x256xbf16, #tpu.memory_space<vmem>>, %arg10: memref<128x128xbf16, #tpu.memory_space<vmem>>) attributes {dimension_semantics = [#tpu.dimension_semantics<parallel>], iteration_bounds = array<i64: 1>, scalar_prefetch = 0 : i64, scratch_operands = 2 : i64, tpu.core_type = #tpu.core_type<tc>, window_params = [{transform_indices = @transform_0, window_bounds = array<i64: 128, 512>}, {pipeline_mode = #tpu.pipeline_mode<synchronous>, transform_indices = @transform_1, window_bounds = array<i64: 512, 256>}, {pipeline_mode = #tpu.pipeline_mode<synchronous>, transform_indices = @transform_2, window_bounds = array<i64: 1, 256>}, {pipeline_mode = #tpu.pipeline_mode<synchronous>, transform_indices = @transform_3, window_bounds = array<i64: 256, 128>}, {pipeline_mode = #tpu.pipeline_mode<synchronous>, transform_indices = @transform_4, window_bounds = array<i64: 1, 128>}, {pipeline_mode = #tpu.pipeline_mode<synchronous>, transform_indices = @transform_5, window_bounds = array<i64: 128, 64>}, {pipeline_mode = #tpu.pipeline_mode<synchronous>, transform_indices = @transform_6, window_bounds = array<i64: 1, 64>}, {transform_indices = @transform_7, window_bounds = array<i64: 128, 64>}]} {
    %c0 = arith.constant 0 : index
    %c0_0 = arith.constant 0 : index
    %0 = vector.load %arg1[%c0, %c0_0] : memref<128x512xf32, #tpu.memory_space<vmem>>, vector<128x512xf32>
    %1 = arith.truncf %0 : vector<128x512xf32> to vector<128x512xbf16>
    %c0_1 = arith.constant 0 : index
    %c0_2 = arith.constant 0 : index
    %2 = vector.load %arg2[%c0_1, %c0_2] : memref<512x256xbf16, #tpu.memory_space<vmem>>, vector<512x256xbf16>
    %cst = arith.constant dense<0.000000e+00> : vector<128x256xf32>
    %3 = tpu.matmul %1, %2, %cst {dimension_numbers = #tpu.dot_dimension_numbers<[1], [0], [0], [1], [0, 0, 1, 1], [], []>} : vector<128x512xbf16>, vector<512x256xbf16>, vector<128x256xf32> -> vector<128x256xf32>
    %c0_3 = arith.constant 0 : index
    %c0_4 = arith.constant 0 : index
    %4 = vector.load %arg3[%c0_3, %c0_4] : memref<1x256xf32, #tpu.memory_space<vmem>>, vector<1x256xf32>
    %5 = vector.broadcast %4 : vector<1x256xf32> to vector<128x256xf32>
    %6 = arith.addf %3, %5 : vector<128x256xf32>
    %cst_5 = arith.constant 0.000000e+00 : f32
    %7 = vector.broadcast %cst_5 : f32 to vector<128x256xf32>
    %8 = arith.maximumf %6, %7 : vector<128x256xf32>
    %9 = arith.truncf %8 : vector<128x256xf32> to vector<128x256xbf16>
    %c0_6 = arith.constant 0 : index
    %c0_7 = arith.constant 0 : index
    %10 = vector.load %arg9[%c0_6, %c0_7] : memref<128x256xbf16, #tpu.memory_space<vmem>>, vector<128x256xbf16>
    tpu.vector_store %arg9[%c0_6, %c0_7], %9 {strides = array<i32>} : memref<128x256xbf16, #tpu.memory_space<vmem>>, vector<128x256xbf16>,
    %c0_8 = arith.constant 0 : index
    %c0_9 = arith.constant 0 : index
    %11 = vector.load %arg9[%c0_8, %c0_9] : memref<128x256xbf16, #tpu.memory_space<vmem>>, vector<128x256xbf16>
    %c0_10 = arith.constant 0 : index
    %c0_11 = arith.constant 0 : index
    %12 = vector.load %arg4[%c0_10, %c0_11] : memref<256x128xbf16, #tpu.memory_space<vmem>>, vector<256x128xbf16>
    %cst_12 = arith.constant dense<0.000000e+00> : vector<128x128xf32>
    %13 = tpu.matmul %11, %12, %cst_12 {dimension_numbers = #tpu.dot_dimension_numbers<[1], [0], [0], [1], [0, 0, 1, 1], [], []>} : vector<128x256xbf16>, vector<256x128xbf16>, vector<128x128xf32> -> vector<128x128xf32>
    %c0_13 = arith.constant 0 : index
    %c0_14 = arith.constant 0 : index
    %14 = vector.load %arg5[%c0_13, %c0_14] : memref<1x128xf32, #tpu.memory_space<vmem>>, vector<1x128xf32>
    %15 = vector.broadcast %14 : vector<1x128xf32> to vector<128x128xf32>
    %16 = arith.addf %13, %15 : vector<128x128xf32>
    %cst_15 = arith.constant 0.000000e+00 : f32
    %17 = vector.broadcast %cst_15 : f32 to vector<128x128xf32>
    %18 = arith.maximumf %16, %17 : vector<128x128xf32>
    %19 = arith.truncf %18 : vector<128x128xf32> to vector<128x128xbf16>
    %c0_16 = arith.constant 0 : index
    %c0_17 = arith.constant 0 : index
    %20 = vector.load %arg10[%c0_16, %c0_17] : memref<128x128xbf16, #tpu.memory_space<vmem>>, vector<128x128xbf16>
    tpu.vector_store %arg10[%c0_16, %c0_17], %19 {strides = array<i32>} : memref<128x128xbf16, #tpu.memory_space<vmem>>, vector<128x128xbf16>,
    %c0_18 = arith.constant 0 : index
    %c0_19 = arith.constant 0 : index
    %21 = vector.load %arg10[%c0_18, %c0_19] : memref<128x128xbf16, #tpu.memory_space<vmem>>, vector<128x128xbf16>
    %c0_20 = arith.constant 0 : index
    %c0_21 = arith.constant 0 : index
    %22 = vector.load %arg6[%c0_20, %c0_21] : memref<128x64xbf16, #tpu.memory_space<vmem>>, vector<128x64xbf16>
    %cst_22 = arith.constant dense<0.000000e+00> : vector<128x64xf32>
    %23 = tpu.matmul %21, %22, %cst_22 {dimension_numbers = #tpu.dot_dimension_numbers<[1], [0], [0], [1], [0, 0, 1, 1], [], []>} : vector<128x128xbf16>, vector<128x64xbf16>, vector<128x64xf32> -> vector<128x64xf32>
    %c0_23 = arith.constant 0 : index
    %c0_24 = arith.constant 0 : index
    %24 = vector.load %arg7[%c0_23, %c0_24] : memref<1x64xf32, #tpu.memory_space<vmem>>, vector<1x64xf32>
    %25 = vector.broadcast %24 : vector<1x64xf32> to vector<128x64xf32>
    %26 = arith.addf %23, %25 : vector<128x64xf32>
    %c0_25 = arith.constant 0 : index
    %c0_26 = arith.constant 0 : index
    %27 = vector.load %arg8[%c0_25, %c0_26] : memref<128x64xf32, #tpu.memory_space<vmem>>, vector<128x64xf32>
    tpu.vector_store %arg8[%c0_25, %c0_26], %26 {strides = array<i32>} : memref<128x64xf32, #tpu.memory_space<vmem>>, vector<128x64xf32>,
    return
  }
  func.func @transform_0(%arg0: i32) -> (i32, i32) {
    %c0_i32 = arith.constant 0 : i32
    %c0_i32_0 = arith.constant 0 : i32
    return %arg0, %c0_i32 : i32, i32
  }
  func.func @transform_1(%arg0: i32) -> (i32, i32) {
    %c0_i32 = arith.constant 0 : i32
    %c0_i32_0 = arith.constant 0 : i32
    %c0_i32_1 = arith.constant 0 : i32
    return %c0_i32, %c0_i32_0 : i32, i32
  }
  func.func @transform_2(%arg0: i32) -> (i32, i32) {
    %c0_i32 = arith.constant 0 : i32
    %c0_i32_0 = arith.constant 0 : i32
    %c0_i32_1 = arith.constant 0 : i32
    return %c0_i32, %c0_i32_0 : i32, i32
  }
  func.func @transform_3(%arg0: i32) -> (i32, i32) {
    %c0_i32 = arith.constant 0 : i32
    %c0_i32_0 = arith.constant 0 : i32
    %c0_i32_1 = arith.constant 0 : i32
    return %c0_i32, %c0_i32_0 : i32, i32
  }
  func.func @transform_4(%arg0: i32) -> (i32, i32) {
    %c0_i32 = arith.constant 0 : i32
    %c0_i32_0 = arith.constant 0 : i32
    %c0_i32_1 = arith.constant 0 : i32
    return %c0_i32, %c0_i32_0 : i32, i32
  }
  func.func @transform_5(%arg0: i32) -> (i32, i32) {
    %c0_i32 = arith.constant 0 : i32
    %c0_i32_0 = arith.constant 0 : i32
    %c0_i32_1 = arith.constant 0 : i32
    return %c0_i32, %c0_i32_0 : i32, i32
  }
  func.func @transform_6(%arg0: i32) -> (i32, i32) {
    %c0_i32 = arith.constant 0 : i32
    %c0_i32_0 = arith.constant 0 : i32
    %c0_i32_1 = arith.constant 0 : i32
    return %c0_i32, %c0_i32_0 : i32, i32
  }
  func.func @transform_7(%arg0: i32) -> (i32, i32) {
    %c0_i32 = arith.constant 0 : i32
    %c0_i32_0 = arith.constant 0 : i32
    return %arg0, %c0_i32 : i32, i32
  }
}

</mosaic_0001>

<llo_original>
// kernel: recognition_forward.1
$region0: #{recognition_forward.1}
  #allocation0 [shape = 'u32[]', space=smem, size = 0x4, offset = 0x4, fixed_abs, tag = 'smem constant byte address 0x4 - core index']
  #allocation1 [shape = 'u32[144,128]{1,0:T(1,128)}', space=vmem, size = 0x12000, scoped, tag = 'internal scratch']
  #allocation2 [shape = 'bf16[128,256]{1,0:T(16,128)(2,1)}', space=vmem, size = 0x10000, scoped, tag = 'scratch operand']
  #allocation3 [shape = 'bf16[128,128]{1,0:T(16,128)(2,1)}', space=vmem, size = 0x8000, scoped, tag = 'scratch operand']
  %s0 = inlined_call_operand.vmem [shape: f32[128,512], index: 0, kind: input, shape index: {}]
  %s1 = inlined_call_operand.vmem [shape: bf16[512,256], index: 1, kind: input, shape index: {}]
  %s2 = inlined_call_operand.vmem [shape: f32[1,256], index: 2, kind: input, shape index: {}]
  %s3 = inlined_call_operand.vmem [shape: bf16[256,128], index: 3, kind: input, shape index: {}]
  %s4 = inlined_call_operand.vmem [shape: f32[1,128], index: 4, kind: input, shape index: {}]
  %s5 = inlined_call_operand.vmem [shape: bf16[128,64], index: 5, kind: input, shape index: {}]
  %s6 = inlined_call_operand.vmem [shape: f32[1,64], index: 6, kind: input, shape index: {}]
  %s7 = inlined_call_operand.vmem [shape: f32[128,64], index: 7, kind: output, shape index: {}]
  %s8 = sld [smem:[#allocation0]]
  $region38: #{recognition_forward.1} parent=0
    _
  %s10 = ssub.s32 1, %s8
  %s11 = scalar_select 0, %s10, %s8
  // Predicated region
  $region2: #{recognition_forward.1} parent=0 // pred_check
    _
  $region3: #{recognition_forward.1} parent=0 // pred_check_branch
    %13 = sbr.rel (0) target = $region5
  $region4: #{recognition_forward.1} parent=0 // pred_region
    _
  $region5: #{recognition_forward.1} parent=0 // pred_fallthru
    _
  // Predicated region
  $region6: #{recognition_forward.1} parent=0 // pred_check
    _
  $region7: #{recognition_forward.1} parent=0 // pred_check_branch
    %15 = sbr.rel (0) target = $region9
  $region8: #{recognition_forward.1} parent=0 // pred_region
    _
  $region9: #{recognition_forward.1} parent=0 // pred_fallthru
    _
  // Predicated region
  $region10: #{recognition_forward.1} parent=0 // pred_check
    _
  $region11: #{recognition_forward.1} parent=0 // pred_check_branch
    %17 = sbr.rel (0) target = $region13
  $region12: #{recognition_forward.1} parent=0 // pred_region
    _
  $region13: #{recognition_forward.1} parent=0 // pred_fallthru
    _
  // Predicated region
  $region14: #{recognition_forward.1} parent=0 // pred_check
    _
  $region15: #{recognition_forward.1} parent=0 // pred_check_branch
    %19 = sbr.rel (0) target = $region17
  $region16: #{recognition_forward.1} parent=0 // pred_region
    _
  $region17: #{recognition_forward.1} parent=0 // pred_fallthru
    _
  // Predicated region
  $region18: #{recognition_forward.1} parent=0 // pred_check
    _
  $region19: #{recognition_forward.1} parent=0 // pred_check_branch
    %21 = sbr.rel (0) target = $region21
  $region20: #{recognition_forward.1} parent=0 // pred_region
    _
  $region21: #{recognition_forward.1} parent=0 // pred_fallthru
    _
  // Predicated region
  $region22: #{recognition_forward.1} parent=0 // pred_check
    _
  $region23: #{recognition_forward.1} parent=0 // pred_check_branch
    %23 = sbr.rel (0) target = $region25
  $region24: #{recognition_forward.1} parent=0 // pred_region
    _
  $region25: #{recognition_forward.1} parent=0 // pred_fallthru
    _
  // Predicated region
  $region26: #{recognition_forward.1} parent=0 // pred_check
    _
  $region27: #{recognition_forward.1} parent=0 // pred_check_branch
    %25 = sbr.rel (0) target = $region29
  $region28: #{recognition_forward.1} parent=0 // pred_region
    _
  $region29: #{recognition_forward.1} parent=0 // pred_fallthru
    _
  %v27 = vld [vmem:[%s0] sm:$0xff]
  %v28 = vld [vmem:[%s0 + $0x8] sm:$0xff]
  %v29 = vld [vmem:[%s0 + $0x10] sm:$0xff]
  %v30 = vld [vmem:[%s0 + $0x18] sm:$0xff]
  %v31 = vld [vmem:[%s0 + $0x20] sm:$0xff]
  %v32 = vld [vmem:[%s0 + $0x28] sm:$0xff]
  %v33 = vld [vmem:[%s0 + $0x30] sm:$0xff]
  %v34 = vld [vmem:[%s0 + $0x38] sm:$0xff]
  %v35 = vld [vmem:[%s0 + $0x40] sm:$0xff]
  %v36 = vld [vmem:[%s0 + $0x48] sm:$0xff]
  %v37 = vld [vmem:[%s0 + $0x50] sm:$0xff]
  %v38 = vld [vmem:[%s0 + $0x58] sm:$0xff]
  %v39 = vld [vmem:[%s0 + $0x60] sm:$0xff]
  %v40 = vld [vmem:[%s0 + $0x68] sm:$0xff]
  %v41 = vld [vmem:[%s0 + $0x70] sm:$0xff]
  %v42 = vld [vmem:[%s0 + $0x78] sm:$0xff]
  %v43 = vld [vmem:[%s0 + $0x80] sm:$0xff]
  %v44 = vld [vmem:[%s0 + $0x88] sm:$0xff]
  %v45 = vld [vmem:[%s0 + $0x90] sm:$0xff]
  %v46 = vld [vmem:[%s0 + $0x98] sm:$0xff]
  %v47 = vld [vmem:[%s0 + $0xa0] sm:$0xff]
  %v48 = vld [vmem:[%s0 + $0xa8] sm:$0xff]
  %v49 = vld [vmem:[%s0 + $0xb0] sm:$0xff]
  %v50 = vld [vmem:[%s0 + $0xb8] sm:$0xff]
  %v51 = vld [vmem:[%s0 + $0xc0] sm:$0xff]
  %v52 = vld [vmem:[%s0 + $0xc8] sm:$0xff]
  %v53 = vld [vmem:[%s0 + $0xd0] sm:$0xff]
  %v54 = vld [vmem:[%s0 + $0xd8] sm:$0xff]
  %v55 = vld [vmem:[%s0 + $0xe0] sm:$0xff]
  %v56 = vld [vmem:[%s0 + $0xe8] sm:$0xff]
  %v57 = vld [vmem:[%s0 + $0xf0] sm:$0xff]
  %v58 = vld [vmem:[%s0 + $0xf8] sm:$0xff]
  %v59 = vld [vmem:[%s0 + $0x100] sm:$0xff]
  %v60 = vld [vmem:[%s0 + $0x108] sm:$0xff]
  %v61 = vld [vmem:[%s0 + $0x110] sm:$0xff]
  %v62 = vld [vmem:[%s0 + $0x118] sm:$0xff]
  %v63 = vld [vmem:[%s0 + $0x120] sm:$0xff]
  %v64 = vld [vmem:[%s0 + $0x128] sm:$0xff]
  %v65 = vld [vmem:[%s0 + $0x130] sm:$0xff]
  %v66 = vld [vmem:[%s0 + $0x138] sm:$0xff]
  %v67 = vld [vmem:[%s0 + $0x140] sm:$0xff]
  %v68 = vld [vmem:[%s0 + $0x148] sm:$0xff]
  %v69 = vld [vmem:[%s0 + $0x150] sm:$0xff]
  %v70 = vld [vmem:[%s0 + $0x158] sm:$0xff]
  %v71 = vld [vmem:[%s0 + $0x160] sm:$0xff]
  %v72 = vld [vmem:[%s0 + $0x168] sm:$0xff]
  %v73 = vld [vmem:[%s0 + $0x170] sm:$0xff]
  %v74 = vld [vmem:[%s0 + $0x178] sm:$0xff]
  %v75 = vld [vmem:[%s0 + $0x180] sm:$0xff]
  %v76 = vld [vmem:[%s0 + $0x188] sm:$0xff]
  %v77 = vld [vmem:[%s0 + $0x190] sm:$0xff]
  %v78 = vld [vmem:[%s0 + $0x198] sm:$0xff]
  %v79 = vld [vmem:[%s0 + $0x1a0] sm:$0xff]
  %v80 = vld [vmem:[%s0 + $0x1a8] sm:$0xff]
  %v81 = vld [vmem:[%s0 + $0x1b0] sm:$0xff]
  %v82 = vld [vmem:[%s0 + $0x1b8] sm:$0xff]
  %v83 = vld [vmem:[%s0 + $0x1c0] sm:$0xff]
  %v84 = vld [vmem:[%s0 + $0x1c8] sm:$0xff]
  %v85 = vld [vmem:[%s0 + $0x1d0] sm:$0xff]
  %v86 = vld [vmem:[%s0 + $0x1d8] sm:$0xff]
  %v87 = vld [vmem:[%s0 + $0x1e0] sm:$0xff]
  %v88 = vld [vmem:[%s0 + $0x1e8] sm:$0xff]
  %v89 = vld [vmem:[%s0 + $0x1f0] sm:$0xff]
  %v90 = vld [vmem:[%s0 + $0x1f8] sm:$0xff]
  %v91 = vpack.c.bf16 %v31, %v27
  %v92 = vpack.c.bf16 %v32, %v28
  %v93 = vpack.c.bf16 %v33, %v29
  %v94 = vpack.c.bf16 %v34, %v30
  %v95 = vpack.c.bf16 %v39, %v35
  %v96 = vpack.c.bf16 %v40, %v36
  %v97 = vpack.c.bf16 %v41, %v37
  %v98 = vpack.c.bf16 %v42, %v38
  %v99 = vpack.c.bf16 %v47, %v43
  %v100 = vpack.c.bf16 %v48, %v44
  %v101 = vpack.c.bf16 %v49, %v45
  %v102 = vpack.c.bf16 %v50, %v46
  %v103 = vpack.c.bf16 %v55, %v51
  %v104 = vpack.c.bf16 %v56, %v52
  %v105 = vpack.c.bf16 %v57, %v53
  %v106 = vpack.c.bf16 %v58, %v54
  %v107 = vpack.c.bf16 %v63, %v59
  %v108 = vpack.c.bf16 %v64, %v60
  %v109 = vpack.c.bf16 %v65, %v61
  %v110 = vpack.c.bf16 %v66, %v62
  %v111 = vpack.c.bf16 %v71, %v67
  %v112 = vpack.c.bf16 %v72, %v68
  %v113 = vpack.c.bf16 %v73, %v69
  %v114 = vpack.c.bf16 %v74, %v70
  %v115 = vpack.c.bf16 %v79, %v75
  %v116 = vpack.c.bf16 %v80, %v76
  %v117 = vpack.c.bf16 %v81, %v77
  %v118 = vpack.c.bf16 %v82, %v78
  %v119 = vpack.c.bf16 %v87, %v83
  %v120 = vpack.c.bf16 %v88, %v84
  %v121 = vpack.c.bf16 %v89, %v85
  %v122 = vpack.c.bf16 %v90, %v86
  %v123 = vld [vmem:[%s1] sm:$0xff]
  %v124 = vld [vmem:[%s1 + $0x8] sm:$0xff]
  %v125 = vld [vmem:[%s1 + $0x10] sm:$0xff]
  %v126 = vld [vmem:[%s1 + $0x18] sm:$0xff]
  %v127 = vld [vmem:[%s1 + $0x20] sm:$0xff]
  %v128 = vld [vmem:[%s1 + $0x28] sm:$0xff]
  %v129 = vld [vmem:[%s1 + $0x30] sm:$0xff]
  %v130 = vld [vmem:[%s1 + $0x38] sm:$0xff]
  %v131 = vld [vmem:[%s1 + $0x40] sm:$0xff]
  %v132 = vld [vmem:[%s1 + $0x48] sm:$0xff]
  %v133 = vld [vmem:[%s1 + $0x50] sm:$0xff]
  %v134 = vld [vmem:[%s1 + $0x58] sm:$0xff]
  %v135 = vld [vmem:[%s1 + $0x60] sm:$0xff]
  %v136 = vld [vmem:[%s1 + $0x68] sm:$0xff]
  %v137 = vld [vmem:[%s1 + $0x70] sm:$0xff]
  %v138 = vld [vmem:[%s1 + $0x78] sm:$0xff]
  %v139 = vld [vmem:[%s1 + $0x80] sm:$0xff]
  %v140 = vld [vmem:[%s1 + $0x88] sm:$0xff]
  %v141 = vld [vmem:[%s1 + $0x90] sm:$0xff]
  %v142 = vld [vmem:[%s1 + $0x98] sm:$0xff]
  %v143 = vld [vmem:[%s1 + $0xa0] sm:$0xff]
  %v144 = vld [vmem:[%s1 + $0xa8] sm:$0xff]
  %v145 = vld [vmem:[%s1 + $0xb0] sm:$0xff]
  %v146 = vld [vmem:[%s1 + $0xb8] sm:$0xff]
  %v147 = vld [vmem:[%s1 + $0xc0] sm:$0xff]
  %v148 = vld [vmem:[%s1 + $0xc8] sm:$0xff]
  %v149 = vld [vmem:[%s1 + $0xd0] sm:$0xff]
  %v150 = vld [vmem:[%s1 + $0xd8] sm:$0xff]
  %v151 = vld [vmem:[%s1 + $0xe0] sm:$0xff]
  %v152 = vld [vmem:[%s1 + $0xe8] sm:$0xff]
  %v153 = vld [vmem:[%s1 + $0xf0] sm:$0xff]
  %v154 = vld [vmem:[%s1 + $0xf8] sm:$0xff]
  %v155 = vld [vmem:[%s1 + $0x100] sm:$0xff]
  %v156 = vld [vmem:[%s1 + $0x108] sm:$0xff]
  %v157 = vld [vmem:[%s1 + $0x110] sm:$0xff]
  %v158 = vld [vmem:[%s1 + $0x118] sm:$0xff]
  %v159 = vld [vmem:[%s1 + $0x120] sm:$0xff]
  %v160 = vld [vmem:[%s1 + $0x128] sm:$0xff]
  %v161 = vld [vmem:[%s1 + $0x130] sm:$0xff]
  %v162 = vld [vmem:[%s1 + $0x138] sm:$0xff]
  %v163 = vld [vmem:[%s1 + $0x140] sm:$0xff]
  %v164 = vld [vmem:[%s1 + $0x148] sm:$0xff]
  %v165 = vld [vmem:[%s1 + $0x150] sm:$0xff]
  %v166 = vld [vmem:[%s1 + $0x158] sm:$0xff]
  %v167 = vld [vmem:[%s1 + $0x160] sm:$0xff]
  %v168 = vld [vmem:[%s1 + $0x168] sm:$0xff]
  %v169 = vld [vmem:[%s1 + $0x170] sm:$0xff]
  %v170 = vld [vmem:[%s1 + $0x178] sm:$0xff]
  %v171 = vld [vmem:[%s1 + $0x180] sm:$0xff]
  %v172 = vld [vmem:[%s1 + $0x188] sm:$0xff]
  %v173 = vld [vmem:[%s1 + $0x190] sm:$0xff]
  %v174 = vld [vmem:[%s1 + $0x198] sm:$0xff]
  %v175 = vld [vmem:[%s1 + $0x1a0] sm:$0xff]
  %v176 = vld [vmem:[%s1 + $0x1a8] sm:$0xff]
  %v177 = vld [vmem:[%s1 + $0x1b0] sm:$0xff]
  %v178 = vld [vmem:[%s1 + $0x1b8] sm:$0xff]
  %v179 = vld [vmem:[%s1 + $0x1c0] sm:$0xff]
  %v180 = vld [vmem:[%s1 + $0x1c8] sm:$0xff]
  %v181 = vld [vmem:[%s1 + $0x1d0] sm:$0xff]
  %v182 = vld [vmem:[%s1 + $0x1d8] sm:$0xff]
  %v183 = vld [vmem:[%s1 + $0x1e0] sm:$0xff]
  %v184 = vld [vmem:[%s1 + $0x1e8] sm:$0xff]
  %v185 = vld [vmem:[%s1 + $0x1f0] sm:$0xff]
  %v186 = vld [vmem:[%s1 + $0x1f8] sm:$0xff]
  %v187 = vld [vmem:[%s2] sm:$0x3]
  %v189 = vlaneseq
  %v190 = vshrl.u32 %v189, 7
  %v191 = vsub.s32 0, %v190
  %v192 = vrot.slane %v187, %v191
  %v193 = vlaneseq
  %v194 = vshrl.u32 %v193, 7
  %v195 = vsub.s32 1, %v194
  %v196 = vrot.slane %v187, %v195
  %v263 = vunpack.c.l.b16 %v123
  %v264 = vunpack.c.h.b16 %v123
  %v265 = vunpack.c.l.b16 %v124
  %v266 = vunpack.c.h.b16 %v124
  %v267 = vunpack.c.l.b16 %v125
  %v268 = vunpack.c.h.b16 %v125
  %v269 = vunpack.c.l.b16 %v126
  %v270 = vunpack.c.h.b16 %v126
  %v271 = vunpack.c.l.b16 %v127
  %v272 = vunpack.c.h.b16 %v127
  %v273 = vunpack.c.l.b16 %v128
  %v274 = vunpack.c.h.b16 %v128
  %v275 = vunpack.c.l.b16 %v129
  %v276 = vunpack.c.h.b16 %v129
  %v277 = vunpack.c.l.b16 %v130
  %v278 = vunpack.c.h.b16 %v130
  %v279 = vunpack.c.l.b16 %v131
  %v280 = vunpack.c.h.b16 %v131
  %v281 = vunpack.c.l.b16 %v132
  %v282 = vunpack.c.h.b16 %v132
  %v283 = vunpack.c.l.b16 %v133
  %v284 = vunpack.c.h.b16 %v133
  %v285 = vunpack.c.l.b16 %v134
  %v286 = vunpack.c.h.b16 %v134
  %v287 = vunpack.c.l.b16 %v135
  %v288 = vunpack.c.h.b16 %v135
  %v289 = vunpack.c.l.b16 %v136
  %v290 = vunpack.c.h.b16 %v136
  %v291 = vunpack.c.l.b16 %v137
  %v292 = vunpack.c.h.b16 %v137
  %v293 = vunpack.c.l.b16 %v138
  %v294 = vunpack.c.h.b16 %v138
  %v295 = vunpack.c.l.b16 %v139
  %v296 = vunpack.c.h.b16 %v139
  %v297 = vunpack.c.l.b16 %v140
  %v298 = vunpack.c.h.b16 %v140
  %v299 = vunpack.c.l.b16 %v141
  %v300 = vunpack.c.h.b16 %v141
  %v301 = vunpack.c.l.b16 %v142
  %v302 = vunpack.c.h.b16 %v142
  %v303 = vunpack.c.l.b16 %v143
  %v304 = vunpack.c.h.b16 %v143
  %v305 = vunpack.c.l.b16 %v144
  %v306 = vunpack.c.h.b16 %v144
  %v307 = vunpack.c.l.b16 %v145
  %v308 = vunpack.c.h.b16 %v145
  %v309 = vunpack.c.l.b16 %v146
  %v310 = vunpack.c.h.b16 %v146
  %v311 = vunpack.c.l.b16 %v147
  %v312 = vunpack.c.h.b16 %v147
  %v313 = vunpack.c.l.b16 %v148
  %v314 = vunpack.c.h.b16 %v148
  %v315 = vunpack.c.l.b16 %v149
  %v316 = vunpack.c.h.b16 %v149
  %v317 = vunpack.c.l.b16 %v150
  %v318 = vunpack.c.h.b16 %v150
  %v319 = vunpack.c.l.b16 %v151
  %v320 = vunpack.c.h.b16 %v151
  %v321 = vunpack.c.l.b16 %v152
  %v322 = vunpack.c.h.b16 %v152
  %v323 = vunpack.c.l.b16 %v153
  %v324 = vunpack.c.h.b16 %v153
  %v325 = vunpack.c.l.b16 %v154
  %v326 = vunpack.c.h.b16 %v154
  %v327 = vunpack.c.l.b16 %v155
  %v328 = vunpack.c.h.b16 %v155
  %v329 = vunpack.c.l.b16 %v156
  %v330 = vunpack.c.h.b16 %v156
  %v331 = vunpack.c.l.b16 %v157
  %v332 = vunpack.c.h.b16 %v157
  %v333 = vunpack.c.l.b16 %v158
  %v334 = vunpack.c.h.b16 %v158
  %v335 = vunpack.c.l.b16 %v159
  %v336 = vunpack.c.h.b16 %v159
  %v337 = vunpack.c.l.b16 %v160
  %v338 = vunpack.c.h.b16 %v160
  %v339 = vunpack.c.l.b16 %v161
  %v340 = vunpack.c.h.b16 %v161
  %v341 = vunpack.c.l.b16 %v162
  %v342 = vunpack.c.h.b16 %v162
  %v343 = vunpack.c.l.b16 %v163
  %v344 = vunpack.c.h.b16 %v163
  %v345 = vunpack.c.l.b16 %v164
  %v346 = vunpack.c.h.b16 %v164
  %v347 = vunpack.c.l.b16 %v165
  %v348 = vunpack.c.h.b16 %v165
  %v349 = vunpack.c.l.b16 %v166
  %v350 = vunpack.c.h.b16 %v166
  %v351 = vunpack.c.l.b16 %v167
  %v352 = vunpack.c.h.b16 %v167
  %v353 = vunpack.c.l.b16 %v168
  %v354 = vunpack.c.h.b16 %v168
  %v355 = vunpack.c.l.b16 %v169
  %v356 = vunpack.c.h.b16 %v169
  %v357 = vunpack.c.l.b16 %v170
  %v358 = vunpack.c.h.b16 %v170
  %v359 = vunpack.c.l.b16 %v171
  %v360 = vunpack.c.h.b16 %v171
  %v361 = vunpack.c.l.b16 %v172
  %v362 = vunpack.c.h.b16 %v172
  %v363 = vunpack.c.l.b16 %v173
  %v364 = vunpack.c.h.b16 %v173
  %v365 = vunpack.c.l.b16 %v174
  %v366 = vunpack.c.h.b16 %v174
  %v367 = vunpack.c.l.b16 %v175
  %v368 = vunpack.c.h.b16 %v175
  %v369 = vunpack.c.l.b16 %v176
  %v370 = vunpack.c.h.b16 %v176
  %v371 = vunpack.c.l.b16 %v177
  %v372 = vunpack.c.h.b16 %v177
  %v373 = vunpack.c.l.b16 %v178
  %v374 = vunpack.c.h.b16 %v178
  %v375 = vunpack.c.l.b16 %v179
  %v376 = vunpack.c.h.b16 %v179
  %v377 = vunpack.c.l.b16 %v180
  %v378 = vunpack.c.h.b16 %v180
  %v379 = vunpack.c.l.b16 %v181
  %v380 = vunpack.c.h.b16 %v181
  %v381 = vunpack.c.l.b16 %v182
  %v382 = vunpack.c.h.b16 %v182
  %v383 = vunpack.c.l.b16 %v183
  %v384 = vunpack.c.h.b16 %v183
  %v385 = vunpack.c.l.b16 %v184
  %v386 = vunpack.c.h.b16 %v184
  %v387 = vunpack.c.l.b16 %v185
  %v388 = vunpack.c.h.b16 %v185
  %v389 = vunpack.c.l.b16 %v186
  %v390 = vunpack.c.h.b16 %v186
  %v391 = vpack.c.b16 %v265, %v263
  %v392 = vpack.c.b16 %v266, %v264
  %v393 = vpack.c.b16 %v269, %v267
  %v394 = vpack.c.b16 %v270, %v268
  %v395 = vpack.c.b16 %v273, %v271
  %v396 = vpack.c.b16 %v274, %v272
  %v397 = vpack.c.b16 %v277, %v275
  %v398 = vpack.c.b16 %v278, %v276
  %v399 = vpack.c.b16 %v281, %v279
  %v400 = vpack.c.b16 %v282, %v280
  %v401 = vpack.c.b16 %v285, %v283
  %v402 = vpack.c.b16 %v286, %v284
  %v403 = vpack.c.b16 %v289, %v287
  %v404 = vpack.c.b16 %v290, %v288
  %v405 = vpack.c.b16 %v293, %v291
  %v406 = vpack.c.b16 %v294, %v292
  %v407 = vpack.c.b16 %v297, %v295
  %v408 = vpack.c.b16 %v298, %v296
  %v409 = vpack.c.b16 %v301, %v299
  %v410 = vpack.c.b16 %v302, %v300
  %v411 = vpack.c.b16 %v305, %v303
  %v412 = vpack.c.b16 %v306, %v304
  %v413 = vpack.c.b16 %v309, %v307
  %v414 = vpack.c.b16 %v310, %v308
  %v415 = vpack.c.b16 %v313, %v311
  %v416 = vpack.c.b16 %v314, %v312
  %v417 = vpack.c.b16 %v317, %v315
  %v418 = vpack.c.b16 %v318, %v316
  %v419 = vpack.c.b16 %v321, %v319
  %v420 = vpack.c.b16 %v322, %v320
  %v421 = vpack.c.b16 %v325, %v323
  %v422 = vpack.c.b16 %v326, %v324
  %v423 = vpack.c.b16 %v329, %v327
  %v424 = vpack.c.b16 %v330, %v328
  %v425 = vpack.c.b16 %v333, %v331
  %v426 = vpack.c.b16 %v334, %v332
  %v427 = vpack.c.b16 %v337, %v335
  %v428 = vpack.c.b16 %v338, %v336
  %v429 = vpack.c.b16 %v341, %v339
  %v430 = vpack.c.b16 %v342, %v340
  %v431 = vpack.c.b16 %v345, %v343
  %v432 = vpack.c.b16 %v346, %v344
  %v433 = vpack.c.b16 %v349, %v347
  %v434 = vpack.c.b16 %v350, %v348
  %v435 = vpack.c.b16 %v353, %v351
  %v436 = vpack.c.b16 %v354, %v352
  %v437 = vpack.c.b16 %v357, %v355
  %v438 = vpack.c.b16 %v358, %v356
  %v439 = vpack.c.b16 %v361, %v359
  %v440 = vpack.c.b16 %v362, %v360
  %v441 = vpack.c.b16 %v365, %v363
  %v442 = vpack.c.b16 %v366, %v364
  %v443 = vpack.c.b16 %v369, %v367
  %v444 = vpack.c.b16 %v370, %v368
  %v445 = vpack.c.b16 %v373, %v371
  %v446 = vpack.c.b16 %v374, %v372
  %v447 = vpack.c.b16 %v377, %v375
  %v448 = vpack.c.b16 %v378, %v376
  %v449 = vpack.c.b16 %v381, %v379
  %v450 = vpack.c.b16 %v382, %v380
  %v451 = vpack.c.b16 %v385, %v383
  %v452 = vpack.c.b16 %v386, %v384
  %v453 = vpack.c.b16 %v389, %v387
  %v454 = vpack.c.b16 %v390, %v388
  %519 = vmatprep.subr.bf16.mxu0 %v392
  %520 = vmatpush1.bf16.msra.mxu0 %v391
  %521 = vmatprep.subr.bf16.mxu0 %v394
  %522 = vmatpush1.bf16.msra.mxu0 %v393
  %523 = vmatprep.subr.bf16.mxu0 %v396
  %524 = vmatpush1.bf16.msra.mxu0 %v395
  %525 = vmatprep.subr.bf16.mxu0 %v398
  %526 = vmatpush1.bf16.msra.mxu0 %v397
  %527 = vmatprep.subr.bf16.mxu0 %v400
  %528 = vmatpush1.bf16.msra.mxu0 %v399
  %529 = vmatprep.subr.bf16.mxu0 %v402
  %530 = vmatpush1.bf16.msra.mxu0 %v401
  %531 = vmatprep.subr.bf16.mxu0 %v404
  %532 = vmatpush1.bf16.msra.mxu0 %v403
  %533 = vmatprep.subr.bf16.mxu0 %v406
  %534 = vmatpush1.bf16.msra.mxu0 %v405
  %535 = vmatprep.subr.bf16.mxu0 %v408
  %536 = vmatpush1.bf16.msra.mxu0 %v407
  %537 = vmatprep.subr.bf16.mxu0 %v410
  %538 = vmatpush1.bf16.msra.mxu0 %v409
  %539 = vmatprep.subr.bf16.mxu0 %v412
  %540 = vmatpush1.bf16.msra.mxu0 %v411
  %541 = vmatprep.subr.bf16.mxu0 %v414
  %542 = vmatpush1.bf16.msra.mxu0 %v413
  %543 = vmatprep.subr.bf16.mxu0 %v416
  %544 = vmatpush1.bf16.msra.mxu0 %v415
  %545 = vmatprep.subr.bf16.mxu0 %v418
  %546 = vmatpush1.bf16.msra.mxu0 %v417
  %547 = vmatprep.subr.bf16.mxu0 %v420
  %548 = vmatpush1.bf16.msra.mxu0 %v419
  %549 = vmatprep.subr.bf16.mxu0 %v422
  %550 = vmatpush1.bf16.msra.mxu0 %v421
  %551 = vmatprep.mubr.bf16.mxu0 %v92
  %552 = vmatmul.mubr.bf16.gmra.mrb[0].mxu0 %v91
  %v553 = vpop.f32.mrb[0].mxu0
  %v554 = vadd.f32 %v192, %v553
  %v555 = vpop.f32.mrb[0].mxu0
  %v556 = vadd.f32 %v196, %v555
  %v557 = vpop.f32.mrb[0].mxu0
  %v558 = vadd.f32 %v192, %v557
  %v559 = vpop.f32.mrb[0].mxu0
  %v560 = vadd.f32 %v196, %v559
  %561 = vmatprep.mubr.bf16.mxu0 %v96
  %562 = vmatmul.mubr.bf16.gmra.mrb[0].mxu0 %v95
  %v563 = vpop.f32.mrb[0].mxu0
  %v564 = vadd.f32 %v192, %v563
  %v565 = vpop.f32.mrb[0].mxu0
  %v566 = vadd.f32 %v196, %v565
  %v567 = vpop.f32.mrb[0].mxu0
  %v568 = vadd.f32 %v192, %v567
  %v569 = vpop.f32.mrb[0].mxu0
  %v570 = vadd.f32 %v196, %v569
  %571 = vmatprep.mubr.bf16.mxu0 %v100
  %572 = vmatmul.mubr.bf16.gmra.mrb[0].mxu0 %v99
  %v573 = vpop.f32.mrb[0].mxu0
  %v574 = vadd.f32 %v192, %v573
  %v575 = vpop.f32.mrb[0].mxu0
  %v576 = vadd.f32 %v196, %v575
  %v577 = vpop.f32.mrb[0].mxu0
  %v578 = vadd.f32 %v192, %v577
  %v579 = vpop.f32.mrb[0].mxu0
  %v580 = vadd.f32 %v196, %v579
  %581 = vmatprep.mubr.bf16.mxu0 %v104
  %582 = vmatmul.mubr.bf16.gmra.mrb[0].mxu0 %v103
  %v583 = vpop.f32.mrb[0].mxu0
  %v584 = vadd.f32 %v192, %v583
  %v585 = vpop.f32.mrb[0].mxu0
  %v586 = vadd.f32 %v196, %v585
  %v587 = vpop.f32.mrb[0].mxu0
  %v588 = vadd.f32 %v192, %v587
  %v589 = vpop.f32.mrb[0].mxu0
  %v590 = vadd.f32 %v196, %v589
  %591 = vmatprep.mubr.bf16.mxu0 %v108
  %592 = vmatmul.mubr.bf16.gmra.mrb[0].mxu0 %v107
  %v593 = vpop.f32.mrb[0].mxu0
  %v594 = vadd.f32 %v192, %v593
  %v595 = vpop.f32.mrb[0].mxu0
  %v596 = vadd.f32 %v196, %v595
  %v597 = vpop.f32.mrb[0].mxu0
  %v598 = vadd.f32 %v192, %v597
  %v599 = vpop.f32.mrb[0].mxu0
  %v600 = vadd.f32 %v196, %v599
  %601 = vmatprep.mubr.bf16.mxu0 %v112
  %602 = vmatmul.mubr.bf16.gmra.mrb[0].mxu0 %v111
  %v603 = vpop.f32.mrb[0].mxu0
  %v604 = vadd.f32 %v192, %v603
  %v605 = vpop.f32.mrb[0].mxu0
  %v606 = vadd.f32 %v196, %v605
  %v607 = vpop.f32.mrb[0].mxu0
  %v608 = vadd.f32 %v192, %v607
  %v609 = vpop.f32.mrb[0].mxu0
  %v610 = vadd.f32 %v196, %v609
  %611 = vmatprep.mubr.bf16.mxu0 %v116
  %612 = vmatmul.mubr.bf16.gmra.mrb[0].mxu0 %v115
  %v613 = vpop.f32.mrb[0].mxu0
  %v614 = vadd.f32 %v192, %v613
  %v615 = vpop.f32.mrb[0].mxu0
  %v616 = vadd.f32 %v196, %v615
  %v617 = vpop.f32.mrb[0].mxu0
  %v618 = vadd.f32 %v192, %v617
  %v619 = vpop.f32.mrb[0].mxu0
  %v620 = vadd.f32 %v196, %v619
  %621 = vmatprep.mubr.bf16.mxu0 %v120
  %622 = vmatmul.mubr.bf16.gmra.mrb[0].mxu0 %v119
  %v623 = vpop.f32.mrb[0].mxu0
  %v624 = vadd.f32 %v192, %v623
  %v625 = vpop.f32.mrb[0].mxu0
  %v626 = vadd.f32 %v196, %v625
  %v627 = vpop.f32.mrb[0].mxu0
  %v628 = vadd.f32 %v192, %v627
  %v629 = vpop.f32.mrb[0].mxu0
  %v630 = vadd.f32 %v196, %v629
  %631 = vdwg.mxu0
  %632 = vmatprep.subr.bf16.mxu0 %v424
  %633 = vmatpush1.bf16.msra.mxu0 %v423
  %634 = vmatprep.subr.bf16.mxu0 %v426
  %635 = vmatpush1.bf16.msra.mxu0 %v425
  %636 = vmatprep.subr.bf16.mxu0 %v428
  %637 = vmatpush1.bf16.msra.mxu0 %v427
  %638 = vmatprep.subr.bf16.mxu0 %v430
  %639 = vmatpush1.bf16.msra.mxu0 %v429
  %640 = vmatprep.subr.bf16.mxu0 %v432
  %641 = vmatpush1.bf16.msra.mxu0 %v431
  %642 = vmatprep.subr.bf16.mxu0 %v434
  %643 = vmatpush1.bf16.msra.mxu0 %v433
  %644 = vmatprep.subr.bf16.mxu0 %v436
  %645 = vmatpush1.bf16.msra.mxu0 %v435
  %646 = vmatprep.subr.bf16.mxu0 %v438
  %647 = vmatpush1.bf16.msra.mxu0 %v437
  %648 = vmatprep.subr.bf16.mxu0 %v440
  %649 = vmatpush1.bf16.msra.mxu0 %v439
  %650 = vmatprep.subr.bf16.mxu0 %v442
  %651 = vmatpush1.bf16.msra.mxu0 %v441
  %652 = vmatprep.subr.bf16.mxu0 %v444
  %653 = vmatpush1.bf16.msra.mxu0 %v443
  %654 = vmatprep.subr.bf16.mxu0 %v446
  %655 = vmatpush1.bf16.msra.mxu0 %v445
  %656 = vmatprep.subr.bf16.mxu0 %v448
  %657 = vmatpush1.bf16.msra.mxu0 %v447
  %658 = vmatprep.subr.bf16.mxu0 %v450
  %659 = vmatpush1.bf16.msra.mxu0 %v449
  %660 = vmatprep.subr.bf16.mxu0 %v452
  %661 = vmatpush1.bf16.msra.mxu0 %v451
  %662 = vmatprep.subr.bf16.mxu0 %v454
  %663 = vmatpush1.bf16.msra.mxu0 %v453
  %664 = vmatprep.mubr.bf16.mxu0 %v94
  %665 = vmatmul.mubr.bf16.gmra.mrb[0].mxu0 %v93
  %v666 = vpop.f32.mrb[0].mxu0
  %v667 = vadd.f32 %v554, %v666
  %v668 = vpop.f32.mrb[0].mxu0
  %v669 = vadd.f32 %v556, %v668
  %v670 = vpop.f32.mrb[0].mxu0
  %v671 = vadd.f32 %v558, %v670
  %v672 = vpop.f32.mrb[0].mxu0
  %v673 = vadd.f32 %v560, %v672
  %674 = vmatprep.mubr.bf16.mxu0 %v98
  %675 = vmatmul.mubr.bf16.gmra.mrb[0].mxu0 %v97
  %v676 = vpop.f32.mrb[0].mxu0
  %v677 = vadd.f32 %v564, %v676
  %v678 = vpop.f32.mrb[0].mxu0
  %v679 = vadd.f32 %v566, %v678
  %v680 = vpop.f32.mrb[0].mxu0
  %v681 = vadd.f32 %v568, %v680
  %v682 = vpop.f32.mrb[0].mxu0
  %v683 = vadd.f32 %v570, %v682
  %684 = vmatprep.mubr.bf16.mxu0 %v102
  %685 = vmatmul.mubr.bf16.gmra.mrb[0].mxu0 %v101
  %v686 = vpop.f32.mrb[0].mxu0
  %v687 = vadd.f32 %v574, %v686
  %v688 = vpop.f32.mrb[0].mxu0
  %v689 = vadd.f32 %v576, %v688
  %v690 = vpop.f32.mrb[0].mxu0
  %v691 = vadd.f32 %v578, %v690
  %v692 = vpop.f32.mrb[0].mxu0
  %v693 = vadd.f32 %v580, %v692
  %694 = vmatprep.mubr.bf16.mxu0 %v106
  %695 = vmatmul.mubr.bf16.gmra.mrb[0].mxu0 %v105
  %v696 = vpop.f32.mrb[0].mxu0
  %v697 = vadd.f32 %v584, %v696
  %v698 = vpop.f32.mrb[0].mxu0
  %v699 = vadd.f32 %v586, %v698
  %v700 = vpop.f32.mrb[0].mxu0
  %v701 = vadd.f32 %v588, %v700
  %v702 = vpop.f32.mrb[0].mxu0
  %v703 = vadd.f32 %v590, %v702
  %704 = vmatprep.mubr.bf16.mxu0 %v110
  %705 = vmatmul.mubr.bf16.gmra.mrb[0].mxu0 %v109
  %v706 = vpop.f32.mrb[0].mxu0
  %v707 = vadd.f32 %v594, %v706
  %v708 = vpop.f32.mrb[0].mxu0
  %v709 = vadd.f32 %v596, %v708
  %v710 = vpop.f32.mrb[0].mxu0
  %v711 = vadd.f32 %v598, %v710
  %v712 = vpop.f32.mrb[0].mxu0
  %v713 = vadd.f32 %v600, %v712
  %714 = vmatprep.mubr.bf16.mxu0 %v114
  %715 = vmatmul.mubr.bf16.gmra.mrb[0].mxu0 %v113
  %v716 = vpop.f32.mrb[0].mxu0
  %v717 = vadd.f32 %v604, %v716
  %v718 = vpop.f32.mrb[0].mxu0
  %v719 = vadd.f32 %v606, %v718
  %v720 = vpop.f32.mrb[0].mxu0
  %v721 = vadd.f32 %v608, %v720
  %v722 = vpop.f32.mrb[0].mxu0
  %v723 = vadd.f32 %v610, %v722
  %724 = vmatprep.mubr.bf16.mxu0 %v118
  %725 = vmatmul.mubr.bf16.gmra.mrb[0].mxu0 %v117
  %v726 = vpop.f32.mrb[0].mxu0
  %v727 = vadd.f32 %v614, %v726
  %v728 = vpop.f32.mrb[0].mxu0
  %v729 = vadd.f32 %v616, %v728
  %v730 = vpop.f32.mrb[0].mxu0
  %v731 = vadd.f32 %v618, %v730
  %v732 = vpop.f32.mrb[0].mxu0
  %v733 = vadd.f32 %v620, %v732
  %734 = vmatprep.mubr.bf16.mxu0 %v122
  %735 = vmatmul.mubr.bf16.gmra.mrb[0].mxu0 %v121
  %v736 = vpop.f32.mrb[0].mxu0
  %v737 = vadd.f32 %v624, %v736
  %v738 = vpop.f32.mrb[0].mxu0
  %v739 = vadd.f32 %v626, %v738
  %v740 = vpop.f32.mrb[0].mxu0
  %v741 = vadd.f32 %v628, %v740
  %v742 = vpop.f32.mrb[0].mxu0
  %v743 = vadd.f32 %v630, %v742
  %744 = vdwg.mxu0
  %v745 = vmax.f32 %v667, 0.0
  %v746 = vmax.f32 %v669, 0.0
  %v747 = vmax.f32 %v671, 0.0
  %v748 = vmax.f32 %v673, 0.0
  %v749 = vmax.f32 %v677, 0.0
  %v750 = vmax.f32 %v679, 0.0
  %v751 = vmax.f32 %v681, 0.0
  %v752 = vmax.f32 %v683, 0.0
  %v753 = vmax.f32 %v687, 0.0
  %v754 = vmax.f32 %v689, 0.0
  %v755 = vmax.f32 %v691, 0.0
  %v756 = vmax.f32 %v693, 0.0
  %v757 = vmax.f32 %v697, 0.0
  %v758 = vmax.f32 %v699, 0.0
  %v759 = vmax.f32 %v701, 0.0
  %v760 = vmax.f32 %v703, 0.0
  %v761 = vmax.f32 %v707, 0.0
  %v762 = vmax.f32 %v709, 0.0
  %v763 = vmax.f32 %v711, 0.0
  %v764 = vmax.f32 %v713, 0.0
  %v765 = vmax.f32 %v717, 0.0
  %v766 = vmax.f32 %v719, 0.0
  %v767 = vmax.f32 %v721, 0.0
  %v768 = vmax.f32 %v723, 0.0
  %v769 = vmax.f32 %v727, 0.0
  %v770 = vmax.f32 %v729, 0.0
  %v771 = vmax.f32 %v731, 0.0
  %v772 = vmax.f32 %v733, 0.0
  %v773 = vmax.f32 %v737, 0.0
  %v774 = vmax.f32 %v739, 0.0
  %v775 = vmax.f32 %v741, 0.0
  %v776 = vmax.f32 %v743, 0.0
  %v777 = vpack.c.bf16 %v747, %v745
  %v778 = vpack.c.bf16 %v748, %v746
  %v779 = vpack.c.bf16 %v751, %v749
  %v780 = vpack.c.bf16 %v752, %v750
  %v781 = vpack.c.bf16 %v755, %v753
  %v782 = vpack.c.bf16 %v756, %v754
  %v783 = vpack.c.bf16 %v759, %v757
  %v784 = vpack.c.bf16 %v760, %v758
  %v785 = vpack.c.bf16 %v763, %v761
  %v786 = vpack.c.bf16 %v764, %v762
  %v787 = vpack.c.bf16 %v767, %v765
  %v788 = vpack.c.bf16 %v768, %v766
  %v789 = vpack.c.bf16 %v771, %v769
  %v790 = vpack.c.bf16 %v772, %v770
  %v791 = vpack.c.bf16 %v775, %v773
  %v792 = vpack.c.bf16 %v776, %v774
  %793 = vst [vmem:[#allocation2] sm:$0xff] %v777
  %794 = vst [vmem:[#allocation2 + $0x8] sm:$0xff] %v778
  %795 = vst [vmem:[#allocation2 + $0x10] sm:$0xff] %v779
  %796 = vst [vmem:[#allocation2 + $0x18] sm:$0xff] %v780
  %797 = vst [vmem:[#allocation2 + $0x20] sm:$0xff] %v781
  %798 = vst [vmem:[#allocation2 + $0x28] sm:$0xff] %v782
  %799 = vst [vmem:[#allocation2 + $0x30] sm:$0xff] %v783
  %800 = vst [vmem:[#allocation2 + $0x38] sm:$0xff] %v784
  %801 = vst [vmem:[#allocation2 + $0x40] sm:$0xff] %v785
  %802 = vst [vmem:[#allocation2 + $0x48] sm:$0xff] %v786
  %803 = vst [vmem:[#allocation2 + $0x50] sm:$0xff] %v787
  %804 = vst [vmem:[#allocation2 + $0x58] sm:$0xff] %v788
  %805 = vst [vmem:[#allocation2 + $0x60] sm:$0xff] %v789
  %806 = vst [vmem:[#allocation2 + $0x68] sm:$0xff] %v790
  %807 = vst [vmem:[#allocation2 + $0x70] sm:$0xff] %v791
  %808 = vst [vmem:[#allocation2 + $0x78] sm:$0xff] %v792
  %v809 = vld [vmem:[#allocation2] sm:$0xff]
  %v810 = vld [vmem:[#allocation2 + $0x8] sm:$0xff]
  %v811 = vld [vmem:[#allocation2 + $0x10] sm:$0xff]
  %v812 = vld [vmem:[#allocation2 + $0x18] sm:$0xff]
  %v813 = vld [vmem:[#allocation2 + $0x20] sm:$0xff]
  %v814 = vld [vmem:[#allocation2 + $0x28] sm:$0xff]
  %v815 = vld [vmem:[#allocation2 + $0x30] sm:$0xff]
  %v816 = vld [vmem:[#allocation2 + $0x38] sm:$0xff]
  %v817 = vld [vmem:[#allocation2 + $0x40] sm:$0xff]
  %v818 = vld [vmem:[#allocation2 + $0x48] sm:$0xff]
  %v819 = vld [vmem:[#allocation2 + $0x50] sm:$0xff]
  %v820 = vld [vmem:[#allocation2 + $0x58] sm:$0xff]
  %v821 = vld [vmem:[#allocation2 + $0x60] sm:$0xff]
  %v822 = vld [vmem:[#allocation2 + $0x68] sm:$0xff]
  %v823 = vld [vmem:[#allocation2 + $0x70] sm:$0xff]
  %v824 = vld [vmem:[#allocation2 + $0x78] sm:$0xff]
  %v825 = vld [vmem:[%s3] sm:$0xf]
  %v826 = vld [vmem:[%s3 + $0x4] sm:$0xf]
  %v827 = vld [vmem:[%s3 + $0x8] sm:$0xf]
  %v828 = vld [vmem:[%s3 + $0xc] sm:$0xf]
  %v829 = vld [vmem:[%s3 + $0x10] sm:$0xf]
  %v830 = vld [vmem:[%s3 + $0x14] sm:$0xf]
  %v831 = vld [vmem:[%s3 + $0x18] sm:$0xf]
  %v832 = vld [vmem:[%s3 + $0x1c] sm:$0xf]
  %v833 = vld [vmem:[%s3 + $0x20] sm:$0xf]
  %v834 = vld [vmem:[%s3 + $0x24] sm:$0xf]
  %v835 = vld [vmem:[%s3 + $0x28] sm:$0xf]
  %v836 = vld [vmem:[%s3 + $0x2c] sm:$0xf]
  %v837 = vld [vmem:[%s3 + $0x30] sm:$0xf]
  %v838 = vld [vmem:[%s3 + $0x34] sm:$0xf]
  %v839 = vld [vmem:[%s3 + $0x38] sm:$0xf]
  %v840 = vld [vmem:[%s3 + $0x3c] sm:$0xf]
  %v841 = vld [vmem:[%s3 + $0x40] sm:$0xf]
  %v842 = vld [vmem:[%s3 + $0x44] sm:$0xf]
  %v843 = vld [vmem:[%s3 + $0x48] sm:$0xf]
  %v844 = vld [vmem:[%s3 + $0x4c] sm:$0xf]
  %v845 = vld [vmem:[%s3 + $0x50] sm:$0xf]
  %v846 = vld [vmem:[%s3 + $0x54] sm:$0xf]
  %v847 = vld [vmem:[%s3 + $0x58] sm:$0xf]
  %v848 = vld [vmem:[%s3 + $0x5c] sm:$0xf]
  %v849 = vld [vmem:[%s3 + $0x60] sm:$0xf]
  %v850 = vld [vmem:[%s3 + $0x64] sm:$0xf]
  %v851 = vld [vmem:[%s3 + $0x68] sm:$0xf]
  %v852 = vld [vmem:[%s3 + $0x6c] sm:$0xf]
  %v853 = vld [vmem:[%s3 + $0x70] sm:$0xf]
  %v854 = vld [vmem:[%s3 + $0x74] sm:$0xf]
  %v855 = vld [vmem:[%s3 + $0x78] sm:$0xf]
  %v856 = vld [vmem:[%s3 + $0x7c] sm:$0xf]
  %v857 = vld [vmem:[%s4] sm:$0x1]
  %v859 = vlaneseq
  %v860 = vshrl.u32 %v859, 7
  %v861 = vsub.s32 0, %v860
  %v862 = vrot.slane %v857, %v861
  %v896 = vunpack.c.l.b16 %v825
  %v897 = vunpack.c.l.b16 %v826
  %v898 = vunpack.c.l.b16 %v827
  %v899 = vunpack.c.l.b16 %v828
  %v900 = vunpack.c.l.b16 %v829
  %v901 = vunpack.c.l.b16 %v830
  %v902 = vunpack.c.l.b16 %v831
  %v903 = vunpack.c.l.b16 %v832
  %v904 = vunpack.c.l.b16 %v833
  %v905 = vunpack.c.l.b16 %v834
  %v906 = vunpack.c.l.b16 %v835
  %v907 = vunpack.c.l.b16 %v836
  %v908 = vunpack.c.l.b16 %v837
  %v909 = vunpack.c.l.b16 %v838
  %v910 = vunpack.c.l.b16 %v839
  %v911 = vunpack.c.l.b16 %v840
  %v912 = vunpack.c.l.b16 %v841
  %v913 = vunpack.c.l.b16 %v842
  %v914 = vunpack.c.l.b16 %v843
  %v915 = vunpack.c.l.b16 %v844
  %v916 = vunpack.c.l.b16 %v845
  %v917 = vunpack.c.l.b16 %v846
  %v918 = vunpack.c.l.b16 %v847
  %v919 = vunpack.c.l.b16 %v848
  %v920 = vunpack.c.l.b16 %v849
  %v921 = vunpack.c.l.b16 %v850
  %v922 = vunpack.c.l.b16 %v851
  %v923 = vunpack.c.l.b16 %v852
  %v924 = vunpack.c.l.b16 %v853
  %v925 = vunpack.c.l.b16 %v854
  %v926 = vunpack.c.l.b16 %v855
  %v927 = vunpack.c.l.b16 %v856
  %v928 = vpack.c.b16 %v897, %v896
  %v929 = vpack.c.b16 %v899, %v898
  %v930 = vpack.c.b16 %v901, %v900
  %v931 = vpack.c.b16 %v903, %v902
  %v932 = vpack.c.b16 %v905, %v904
  %v933 = vpack.c.b16 %v907, %v906
  %v934 = vpack.c.b16 %v909, %v908
  %v935 = vpack.c.b16 %v911, %v910
  %v936 = vpack.c.b16 %v913, %v912
  %v937 = vpack.c.b16 %v915, %v914
  %v938 = vpack.c.b16 %v917, %v916
  %v939 = vpack.c.b16 %v919, %v918
  %v940 = vpack.c.b16 %v921, %v920
  %v941 = vpack.c.b16 %v923, %v922
  %v942 = vpack.c.b16 %v925, %v924
  %v943 = vpack.c.b16 %v927, %v926
  %960 = vmatprep.subr.bf16.mxu0 0
  %961 = vmatpush1.bf16.msra.mxu0 %v928
  %962 = vmatprep.subr.bf16.mxu0 0
  %963 = vmatpush1.bf16.msra.mxu0 %v929
  %964 = vmatprep.subr.bf16.mxu0 0
  %965 = vmatpush1.bf16.msra.mxu0 %v930
  %966 = vmatprep.subr.bf16.mxu0 0
  %967 = vmatpush1.bf16.msra.mxu0 %v931
  %968 = vmatprep.subr.bf16.mxu0 0
  %969 = vmatpush1.bf16.msra.mxu0 %v932
  %970 = vmatprep.subr.bf16.mxu0 0
  %971 = vmatpush1.bf16.msra.mxu0 %v933
  %972 = vmatprep.subr.bf16.mxu0 0
  %973 = vmatpush1.bf16.msra.mxu0 %v934
  %974 = vmatprep.subr.bf16.mxu0 0
  %975 = vmatpush1.bf16.msra.mxu0 %v935
  %976 = vmatprep.subr.bf16.mxu0 0
  %977 = vmatpush1.bf16.msra.mxu0 %v936
  %978 = vmatprep.subr.bf16.mxu0 0
  %979 = vmatpush1.bf16.msra.mxu0 %v937
  %980 = vmatprep.subr.bf16.mxu0 0
  %981 = vmatpush1.bf16.msra.mxu0 %v938
  %982 = vmatprep.subr.bf16.mxu0 0
  %983 = vmatpush1.bf16.msra.mxu0 %v939
  %984 = vmatprep.subr.bf16.mxu0 0
  %985 = vmatpush1.bf16.msra.mxu0 %v940
  %986 = vmatprep.subr.bf16.mxu0 0
  %987 = vmatpush1.bf16.msra.mxu0 %v941
  %988 = vmatprep.subr.bf16.mxu0 0
  %989 = vmatpush1.bf16.msra.mxu0 %v942
  %990 = vmatprep.subr.bf16.mxu0 0
  %991 = vmatpush1.bf16.msra.mxu0 %v943
  %992 = vmatprep.mubr.bf16.mxu0 %v810
  %993 = vmatmul.mubr.bf16.gmra.mrb[0].mxu0 %v809
  %v994 = vpop.f32.mrb[0].mxu0
  %v995 = vadd.f32 %v862, %v994
  %v996 = vpop.f32.mrb[0].mxu0
  %v997 = vpop.f32.mrb[0].mxu0
  %v998 = vadd.f32 %v862, %v997
  %v999 = vpop.f32.mrb[0].mxu0
  %1000 = vmatprep.mubr.bf16.mxu0 %v812
  %1001 = vmatmul.mubr.bf16.gmra.mrb[0].mxu0 %v811
  %v1002 = vpop.f32.mrb[0].mxu0
  %v1003 = vadd.f32 %v862, %v1002
  %v1004 = vpop.f32.mrb[0].mxu0
  %v1005 = vpop.f32.mrb[0].mxu0
  %v1006 = vadd.f32 %v862, %v1005
  %v1007 = vpop.f32.mrb[0].mxu0
  %1008 = vmatprep.mubr.bf16.mxu0 %v814
  %1009 = vmatmul.mubr.bf16.gmra.mrb[0].mxu0 %v813
  %v1010 = vpop.f32.mrb[0].mxu0
  %v1011 = vadd.f32 %v862, %v1010
  %v1012 = vpop.f32.mrb[0].mxu0
  %v1013 = vpop.f32.mrb[0].mxu0
  %v1014 = vadd.f32 %v862, %v1013
  %v1015 = vpop.f32.mrb[0].mxu0
  %1016 = vmatprep.mubr.bf16.mxu0 %v816
  %1017 = vmatmul.mubr.bf16.gmra.mrb[0].mxu0 %v815
  %v1018 = vpop.f32.mrb[0].mxu0
  %v1019 = vadd.f32 %v862, %v1018
  %v1020 = vpop.f32.mrb[0].mxu0
  %v1021 = vpop.f32.mrb[0].mxu0
  %v1022 = vadd.f32 %v862, %v1021
  %v1023 = vpop.f32.mrb[0].mxu0
  %1024 = vmatprep.mubr.bf16.mxu0 %v818
  %1025 = vmatmul.mubr.bf16.gmra.mrb[0].mxu0 %v817
  %v1026 = vpop.f32.mrb[0].mxu0
  %v1027 = vadd.f32 %v862, %v1026
  %v1028 = vpop.f32.mrb[0].mxu0
  %v1029 = vpop.f32.mrb[0].mxu0
  %v1030 = vadd.f32 %v862, %v1029
  %v1031 = vpop.f32.mrb[0].mxu0
  %1032 = vmatprep.mubr.bf16.mxu0 %v820
  %1033 = vmatmul.mubr.bf16.gmra.mrb[0].mxu0 %v819
  %v1034 = vpop.f32.mrb[0].mxu0
  %v1035 = vadd.f32 %v862, %v1034
  %v1036 = vpop.f32.mrb[0].mxu0
  %v1037 = vpop.f32.mrb[0].mxu0
  %v1038 = vadd.f32 %v862, %v1037
  %v1039 = vpop.f32.mrb[0].mxu0
  %1040 = vmatprep.mubr.bf16.mxu0 %v822
  %1041 = vmatmul.mubr.bf16.gmra.mrb[0].mxu0 %v821
  %v1042 = vpop.f32.mrb[0].mxu0
  %v1043 = vadd.f32 %v862, %v1042
  %v1044 = vpop.f32.mrb[0].mxu0
  %v1045 = vpop.f32.mrb[0].mxu0
  %v1046 = vadd.f32 %v862, %v1045
  %v1047 = vpop.f32.mrb[0].mxu0
  %1048 = vmatprep.mubr.bf16.mxu0 %v824
  %1049 = vmatmul.mubr.bf16.gmra.mrb[0].mxu0 %v823
  %v1050 = vpop.f32.mrb[0].mxu0
  %v1051 = vadd.f32 %v862, %v1050
  %v1052 = vpop.f32.mrb[0].mxu0
  %v1053 = vpop.f32.mrb[0].mxu0
  %v1054 = vadd.f32 %v862, %v1053
  %v1055 = vpop.f32.mrb[0].mxu0
  %1056 = vdwg.mxu0
  %v1057 = vmax.f32 %v995, 0.0
  %v1058 = vmax.f32 %v998, 0.0
  %v1059 = vmax.f32 %v1003, 0.0
  %v1060 = vmax.f32 %v1006, 0.0
  %v1061 = vmax.f32 %v1011, 0.0
  %v1062 = vmax.f32 %v1014, 0.0
  %v1063 = vmax.f32 %v1019, 0.0
  %v1064 = vmax.f32 %v1022, 0.0
  %v1065 = vmax.f32 %v1027, 0.0
  %v1066 = vmax.f32 %v1030, 0.0
  %v1067 = vmax.f32 %v1035, 0.0
  %v1068 = vmax.f32 %v1038, 0.0
  %v1069 = vmax.f32 %v1043, 0.0
  %v1070 = vmax.f32 %v1046, 0.0
  %v1071 = vmax.f32 %v1051, 0.0
  %v1072 = vmax.f32 %v1054, 0.0
  %v1073 = vpack.c.bf16 %v1058, %v1057
  %v1074 = vpack.c.bf16 %v1060, %v1059
  %v1075 = vpack.c.bf16 %v1062, %v1061
  %v1076 = vpack.c.bf16 %v1064, %v1063
  %v1077 = vpack.c.bf16 %v1066, %v1065
  %v1078 = vpack.c.bf16 %v1068, %v1067
  %v1079 = vpack.c.bf16 %v1070, %v1069
  %v1080 = vpack.c.bf16 %v1072, %v1071
  %1081 = vst [vmem:[#allocation3] sm:$0xff] %v1073
  %1082 = vst [vmem:[#allocation3 + $0x8] sm:$0xff] %v1074
  %1083 = vst [vmem:[#allocation3 + $0x10] sm:$0xff] %v1075
  %1084 = vst [vmem:[#allocation3 + $0x18] sm:$0xff] %v1076
  %1085 = vst [vmem:[#allocation3 + $0x20] sm:$0xff] %v1077
  %1086 = vst [vmem:[#allocation3 + $0x28] sm:$0xff] %v1078
  %1087 = vst [vmem:[#allocation3 + $0x30] sm:$0xff] %v1079
  %1088 = vst [vmem:[#allocation3 + $0x38] sm:$0xff] %v1080
  %v1089 = vld [vmem:[#allocation3] sm:$0xff]
  %v1090 = vld [vmem:[#allocation3 + $0x8] sm:$0xff]
  %v1091 = vld [vmem:[#allocation3 + $0x10] sm:$0xff]
  %v1092 = vld [vmem:[#allocation3 + $0x18] sm:$0xff]
  %v1093 = vld [vmem:[#allocation3 + $0x20] sm:$0xff]
  %v1094 = vld [vmem:[#allocation3 + $0x28] sm:$0xff]
  %v1095 = vld [vmem:[#allocation3 + $0x30] sm:$0xff]
  %v1096 = vld [vmem:[#allocation3 + $0x38] sm:$0xff]
  %v1097 = vld [vmem:[%s5] sm:$0xf]
  %v1098 = vld [vmem:[%s5 + $0x4] sm:$0xf]
  %v1099 = vld [vmem:[%s5 + $0x8] sm:$0xf]
  %v1100 = vld [vmem:[%s5 + $0xc] sm:$0xf]
  %v1101 = vld [vmem:[%s5 + $0x10] sm:$0xf]
  %v1102 = vld [vmem:[%s5 + $0x14] sm:$0xf]
  %v1103 = vld [vmem:[%s5 + $0x18] sm:$0xf]
  %v1104 = vld [vmem:[%s5 + $0x1c] sm:$0xf]
  %v1105 = vld [vmem:[%s5 + $0x20] sm:$0xf]
  %v1106 = vld [vmem:[%s5 + $0x24] sm:$0xf]
  %v1107 = vld [vmem:[%s5 + $0x28] sm:$0xf]
  %v1108 = vld [vmem:[%s5 + $0x2c] sm:$0xf]
  %v1109 = vld [vmem:[%s5 + $0x30] sm:$0xf]
  %v1110 = vld [vmem:[%s5 + $0x34] sm:$0xf]
  %v1111 = vld [vmem:[%s5 + $0x38] sm:$0xf]
  %v1112 = vld [vmem:[%s5 + $0x3c] sm:$0xf]
  %v1113 = vld [vmem:[%s6] sm:$0x1]
  %v1115 = vlaneseq
  %v1116 = vshrl.u32 %v1115, 7
  %v1117 = vsub.s32 0, %v1116
  %v1118 = vrot.slane %v1113, %v1117
  %v1136 = vunpack.c.l.b16 %v1097
  %v1137 = vunpack.c.l.b16 %v1098
  %v1138 = vunpack.c.l.b16 %v1099
  %v1139 = vunpack.c.l.b16 %v1100
  %v1140 = vunpack.c.l.b16 %v1101
  %v1141 = vunpack.c.l.b16 %v1102
  %v1142 = vunpack.c.l.b16 %v1103
  %v1143 = vunpack.c.l.b16 %v1104
  %v1144 = vunpack.c.l.b16 %v1105
  %v1145 = vunpack.c.l.b16 %v1106
  %v1146 = vunpack.c.l.b16 %v1107
  %v1147 = vunpack.c.l.b16 %v1108
  %v1148 = vunpack.c.l.b16 %v1109
  %v1149 = vunpack.c.l.b16 %v1110
  %v1150 = vunpack.c.l.b16 %v1111
  %v1151 = vunpack.c.l.b16 %v1112
  %v1152 = vpack.c.b16 %v1137, %v1136
  %v1153 = vpack.c.b16 %v1139, %v1138
  %v1154 = vpack.c.b16 %v1141, %v1140
  %v1155 = vpack.c.b16 %v1143, %v1142
  %v1156 = vpack.c.b16 %v1145, %v1144
  %v1157 = vpack.c.b16 %v1147, %v1146
  %v1158 = vpack.c.b16 %v1149, %v1148
  %v1159 = vpack.c.b16 %v1151, %v1150
  %1168 = vmatprep.subr.bf16.mxu0 0
  %1169 = vmatpush1.bf16.msra.mxu0 %v1152
  %1170 = vmatprep.subr.bf16.mxu0 0
  %1171 = vmatpush1.bf16.msra.mxu0 %v1153
  %1172 = vmatprep.subr.bf16.mxu0 0
  %1173 = vmatpush1.bf16.msra.mxu0 %v1154
  %1174 = vmatprep.subr.bf16.mxu0 0
  %1175 = vmatpush1.bf16.msra.mxu0 %v1155
  %1176 = vmatprep.subr.bf16.mxu0 0
  %1177 = vmatpush1.bf16.msra.mxu0 %v1156
  %1178 = vmatprep.subr.bf16.mxu0 0
  %1179 = vmatpush1.bf16.msra.mxu0 %v1157
  %1180 = vmatprep.subr.bf16.mxu0 0
  %1181 = vmatpush1.bf16.msra.mxu0 %v1158
  %1182 = vmatprep.subr.bf16.mxu0 0
  %1183 = vmatpush1.bf16.msra.mxu0 %v1159
  %1184 = vmatprep.subr.bf16.mxu0 0
  %1185 = vmatpush1.bf16.msra.mxu0 0
  %1186 = vmatprep.subr.bf16.mxu0 0
  %1187 = vmatpush1.bf16.msra.mxu0 0
  %1188 = vmatprep.subr.bf16.mxu0 0
  %1189 = vmatpush1.bf16.msra.mxu0 0
  %1190 = vmatprep.subr.bf16.mxu0 0
  %1191 = vmatpush1.bf16.msra.mxu0 0
  %1192 = vmatprep.subr.bf16.mxu0 0
  %1193 = vmatpush1.bf16.msra.mxu0 0
  %1194 = vmatprep.subr.bf16.mxu0 0
  %1195 = vmatpush1.bf16.msra.mxu0 0
  %1196 = vmatprep.subr.bf16.mxu0 0
  %1197 = vmatpush1.bf16.msra.mxu0 0
  %1198 = vmatprep.subr.bf16.mxu0 0
  %1199 = vmatpush1.bf16.msra.mxu0 0
  %1200 = vmatprep.mubr.bf16.mxu0 0
  %1201 = vmatmul.mubr.bf16.gmra.mrb[0].mxu0 %v1089
  %v1202 = vpop.f32.mrb[0].mxu0
  %v1203 = vadd.f32 %v1118, %v1202
  %v1204 = vpop.f32.mrb[0].mxu0
  %v1205 = vpop.f32.mrb[0].mxu0
  %v1206 = vadd.f32 %v1118, %v1205
  %v1207 = vpop.f32.mrb[0].mxu0
  %1208 = vmatprep.mubr.bf16.mxu0 0
  %1209 = vmatmul.mubr.bf16.gmra.mrb[0].mxu0 %v1090
  %v1210 = vpop.f32.mrb[0].mxu0
  %v1211 = vadd.f32 %v1118, %v1210
  %v1212 = vpop.f32.mrb[0].mxu0
  %v1213 = vpop.f32.mrb[0].mxu0
  %v1214 = vadd.f32 %v1118, %v1213
  %v1215 = vpop.f32.mrb[0].mxu0
  %1216 = vmatprep.mubr.bf16.mxu0 0
  %1217 = vmatmul.mubr.bf16.gmra.mrb[0].mxu0 %v1091
  %v1218 = vpop.f32.mrb[0].mxu0
  %v1219 = vadd.f32 %v1118, %v1218
  %v1220 = vpop.f32.mrb[0].mxu0
  %v1221 = vpop.f32.mrb[0].mxu0
  %v1222 = vadd.f32 %v1118, %v1221
  %v1223 = vpop.f32.mrb[0].mxu0
  %1224 = vmatprep.mubr.bf16.mxu0 0
  %1225 = vmatmul.mubr.bf16.gmra.mrb[0].mxu0 %v1092
  %v1226 = vpop.f32.mrb[0].mxu0
  %v1227 = vadd.f32 %v1118, %v1226
  %v1228 = vpop.f32.mrb[0].mxu0
  %v1229 = vpop.f32.mrb[0].mxu0
  %v1230 = vadd.f32 %v1118, %v1229
  %v1231 = vpop.f32.mrb[0].mxu0
  %1232 = vmatprep.mubr.bf16.mxu0 0
  %1233 = vmatmul.mubr.bf16.gmra.mrb[0].mxu0 %v1093
  %v1234 = vpop.f32.mrb[0].mxu0
  %v1235 = vadd.f32 %v1118, %v1234
  %v1236 = vpop.f32.mrb[0].mxu0
  %v1237 = vpop.f32.mrb[0].mxu0
  %v1238 = vadd.f32 %v1118, %v1237
  %v1239 = vpop.f32.mrb[0].mxu0
  %1240 = vmatprep.mubr.bf16.mxu0 0
  %1241 = vmatmul.mubr.bf16.gmra.mrb[0].mxu0 %v1094
  %v1242 = vpop.f32.mrb[0].mxu0
  %v1243 = vadd.f32 %v1118, %v1242
  %v1244 = vpop.f32.mrb[0].mxu0
  %v1245 = vpop.f32.mrb[0].mxu0
  %v1246 = vadd.f32 %v1118, %v1245
  %v1247 = vpop.f32.mrb[0].mxu0
  %1248 = vmatprep.mubr.bf16.mxu0 0
  %1249 = vmatmul.mubr.bf16.gmra.mrb[0].mxu0 %v1095
  %v1250 = vpop.f32.mrb[0].mxu0
  %v1251 = vadd.f32 %v1118, %v1250
  %v1252 = vpop.f32.mrb[0].mxu0
  %v1253 = vpop.f32.mrb[0].mxu0
  %v1254 = vadd.f32 %v1118, %v1253
  %v1255 = vpop.f32.mrb[0].mxu0
  %1256 = vmatprep.mubr.bf16.mxu0 0
  %1257 = vmatmul.mubr.bf16.gmra.mrb[0].mxu0 %v1096
  %v1258 = vpop.f32.mrb[0].mxu0
  %v1259 = vadd.f32 %v1118, %v1258
  %v1260 = vpop.f32.mrb[0].mxu0
  %v1261 = vpop.f32.mrb[0].mxu0
  %v1262 = vadd.f32 %v1118, %v1261
  %v1263 = vpop.f32.mrb[0].mxu0
  %1264 = vdwg.mxu0
  %vm1265 = vcmask 523264
  %1266 = vst.msk [vmem:[%s7] sm:$0xff] %vm1265, %v1203
  %1267 = vst.msk [vmem:[%s7 + $0x8] sm:$0xff] %vm1265, %v1206
  %1268 = vst.msk [vmem:[%s7 + $0x10] sm:$0xff] %vm1265, %v1211
  %1269 = vst.msk [vmem:[%s7 + $0x18] sm:$0xff] %vm1265, %v1214
  %1270 = vst.msk [vmem:[%s7 + $0x20] sm:$0xff] %vm1265, %v1219
  %1271 = vst.msk [vmem:[%s7 + $0x28] sm:$0xff] %vm1265, %v1222
  %1272 = vst.msk [vmem:[%s7 + $0x30] sm:$0xff] %vm1265, %v1227
  %1273 = vst.msk [vmem:[%s7 + $0x38] sm:$0xff] %vm1265, %v1230
  %1274 = vst.msk [vmem:[%s7 + $0x40] sm:$0xff] %vm1265, %v1235
  %1275 = vst.msk [vmem:[%s7 + $0x48] sm:$0xff] %vm1265, %v1238
  %1276 = vst.msk [vmem:[%s7 + $0x50] sm:$0xff] %vm1265, %v1243
  %1277 = vst.msk [vmem:[%s7 + $0x58] sm:$0xff] %vm1265, %v1246
  %1278 = vst.msk [vmem:[%s7 + $0x60] sm:$0xff] %vm1265, %v1251
  %1279 = vst.msk [vmem:[%s7 + $0x68] sm:$0xff] %vm1265, %v1254
  %1280 = vst.msk [vmem:[%s7 + $0x70] sm:$0xff] %vm1265, %v1259
  %1281 = vst.msk [vmem:[%s7 + $0x78] sm:$0xff] %vm1265, %v1262
  // Predicated region
  $region30: #{recognition_forward.1} parent=0 // pred_check
    _
  $region31: #{recognition_forward.1} parent=0 // pred_check_branch
    %1283 = sbr.rel (0) target = $region33
  $region32: #{recognition_forward.1} parent=0 // pred_region
    _
  $region33: #{recognition_forward.1} parent=0 // pred_fallthru
    _
  // Predicated region
  $region34: #{recognition_forward.1} parent=0 // pred_check
    _
  $region35: #{recognition_forward.1} parent=0 // pred_check_branch
    %1285 = sbr.rel (0) target = $region37
  $region36: #{recognition_forward.1} parent=0 // pred_region
    _
  $region37: #{recognition_forward.1} parent=0 // pred_fallthru
    _

</llo_original>
